<compile_context>
chip_gen: v6e
topology: v6e:2x2x1
jax: 0.10.0
libtpu: 0.0.40
codegen_flags: <defaults>
</compile_context>

<pallas_src>
import functools

import jax
import jax.numpy as jnp
from jax.experimental import pallas as pl
from jax.experimental.pallas import tpu as pltpu

_INV_SQRT2 = 0.7071067811865476


def _round_up(x: int, m: int) -> int:
    return (x + m - 1) // m * m


# --------------------------------------------------------------------------
# Kernel
# --------------------------------------------------------------------------
def _ffn_kernel(x_ref, w1_ref, b1_ref, w2_ref, b2_ref, o_ref):
    # x_ref:  (TM, Dp)   input tile, native dtype (cast to bf16 in-kernel)
    # w1_ref: (Dp, TH)   bf16 chunk of hidden_layer.weight^T
    # b1_ref: (1,  TH)   f32 chunk of hidden_layer.bias
    # w2_ref: (TH, Dp)   bf16 chunk of output_layer.weight^T
    # b2_ref: (1,  Dp)   f32 output_layer.bias
    # o_ref:  (TM, Dp)   output tile, VMEM-resident across the hidden axis
    k = pl.program_id(1)

    x = x_ref[...].astype(jnp.bfloat16)
    h = jnp.dot(x, w1_ref[...], preferred_element_type=jnp.float32)
    h = h + b1_ref[...]
    # Exact GELU (PyTorch nn.GELU() default): 0.5*x*(1+erf(x/sqrt(2))), f32.
    h = 0.5 * h * (1.0 + jax.lax.erf(h * jnp.float32(_INV_SQRT2)))
    # TODO(synk): dropout_rate is 0.0 (identity); a nonzero rate would need a
    # pltpu.prng_seed + pltpu.prng_random_bits keep-mask here.
    contrib = jnp.dot(h.astype(jnp.bfloat16), w2_ref[...],
                      preferred_element_type=jnp.float32)

    @pl.when(k == 0)
    def _first():
        # Seed with the output bias exactly once; no separate scratch.
        o_ref[...] = (b2_ref[...] + contrib).astype(o_ref.dtype)

    @pl.when(k > 0)
    def _accumulate():
        o_ref[...] = (o_ref[...].astype(jnp.float32) + contrib).astype(o_ref.dtype)


# --------------------------------------------------------------------------
# Tile / VMEM selection helpers (all trace-time Python)
# --------------------------------------------------------------------------
@functools.lru_cache(maxsize=None)
def _hw_defaults():
    """(tm, th, vmem_limit_bytes) per TPU generation."""
    try:
        info = pltpu.get_tpu_info()
        vmem = int(getattr(info, "vmem_capacity_bytes", 64 << 20))
    except Exception:  # pragma: no cover - conservative fallback
        vmem = 64 << 20
    if vmem >= (100 << 20):
        # v5e / v6e: 128 MiB physical VMEM -> big tiles, cheap weight re-reads.
        return 512, 1024, 96 << 20
    # v7x (64 MiB per TensorCore) or unknown: stay under the per-TC budget.
    return 512, 512, 56 << 20


def _fit_vmem(tm, th, d_pad, x_itemsize, vmem_limit):
    """Shrink th (first) then tm until double-buffered blocks fit."""
    def usage(tm_, th_):
        return 2 * (tm_ * d_pad * x_itemsize      # x tile (native dtype)
                    + d_pad * th_ * 2             # w1 chunk (bf16)
                    + th_ * d_pad * 2             # w2 chunk (bf16)
                    + tm_ * d_pad * 4             # output tile (f32 worst case)
                    + (th_ + d_pad) * 4)          # biases
    budget = int(vmem_limit * 0.9)
    while usage(tm, th) > budget:
        if th > 256:
            th //= 2
        elif tm > 128:
            tm //= 2
        else:
            break
    return tm, th


def _choose_tm(n, tm_max):
    """Token tile: multiple of 16 that pads round_up(n,16) tightly."""
    n16 = _round_up(n, 16)
    if n16 <= tm_max:
        return n16
    best_t, best_pad = tm_max, _round_up(n16, tm_max)
    t = tm_max
    while t > 128:
        t //= 2
        pad = _round_up(n16, t)
        if pad < best_pad:
            best_t, best_pad = t, pad
    return best_t


def _choose_th(th_max, h_pad):
    """Largest multiple of 128 that is <= th_max and divides h_pad."""
    t = max(128, min((th_max // 128) * 128, h_pad))
    while h_pad % t != 0:
        t -= 128
    return t


# --------------------------------------------------------------------------
# Host-side wrappers
# --------------------------------------------------------------------------
def prepare_params(w1, b1, w2, b2):
    """One-time (outside the hot path) cast/pad of FFN params.

    w1: (d_model, d_hidden)  b1: (d_hidden,)
    w2: (d_hidden, d_model)  b2: (d_model,)
    Returns lane-aligned bf16 weights and f32 row-vector biases.
    """
    d_model, d_hidden = w1.shape
    d_pad = _round_up(d_model, 128)
    h_pad = _round_up(d_hidden, 128)
    w1p = jnp.pad(w1.astype(jnp.bfloat16),
                  ((0, d_pad - d_model), (0, h_pad - d_hidden)))
    w2p = jnp.pad(w2.astype(jnp.bfloat16),
                  ((0, h_pad - d_hidden), (0, d_pad - d_model)))
    b1p = jnp.pad(b1.astype(jnp.float32), (0, h_pad - d_hidden)).reshape(1, h_pad)
    b2p = jnp.pad(b2.astype(jnp.float32), (0, d_pad - d_model)).reshape(1, d_pad)
    return w1p, b1p, w2p, b2p


@functools.partial(jax.jit, static_argnames=("tm", "th"))
def feed_forward(x, w1p, b1p, w2p, b2p, *, tm=None, th=None):
    """x: (..., d_model) -> (..., d_model), params from prepare_params()."""
    orig_dtype = x.dtype
    d_model = x.shape[-1]
    n = 1
    for s in x.shape[:-1]:
        n *= s
    d_pad, h_pad = w1p.shape

    tm_d, th_d, vmem_limit = _hw_defaults()
    tm = tm_d if tm is None else tm
    th = th_d if th is None else th

    tm_max, th_max = _fit_vmem(tm, th, d_pad, jnp.dtype(orig_dtype).itemsize,
                               vmem_limit)
    tm_eff = _choose_tm(n, tm_max)
    th_eff = _choose_th(th_max, h_pad)
    n_pad = _round_up(_round_up(n, 16), tm_eff)
    num_k = h_pad // th_eff
    grid = (n_pad // tm_eff, num_k)

    # Accumulate directly into o_ref.  Exact whenever o_ref is f32 or there is
    # a single hidden chunk; otherwise fall back to an f32 kernel output and
    # one cheap cast afterwards (avoids bf16 partial-sum rounding across k).
    out_dtype = orig_dtype if (orig_dtype == jnp.float32 or num_k == 1) \
        else jnp.float32

    x2 = x.reshape(n, d_model)
    if (n_pad, d_pad) != (n, d_model):
        x2 = jnp.pad(x2, ((0, n_pad - n), (0, d_pad - d_model)))

    flops = 4 * n_pad * d_pad * h_pad            # two matmuls
    transcendentals = n_pad * h_pad              # one erf per hidden activation
    bytes_accessed = (
        n_pad * d_pad * jnp.dtype(orig_dtype).itemsize             # x once
        + (w1p.size + w2p.size) * 2 * grid[0]                      # weights per token tile
        + (b1p.size + b2p.size) * 4 * grid[0]                      # biases
        + n_pad * d_pad * jnp.dtype(out_dtype).itemsize)           # output once

    out2 = pl.pallas_call(
        _ffn_kernel,
        out_shape=jax.ShapeDtypeStruct((n_pad, d_pad), out_dtype),
        grid_spec=pltpu.PrefetchScalarGridSpec(
            num_scalar_prefetch=0,
            grid=grid,
            in_specs=[
                pl.BlockSpec((tm_eff, d_pad), lambda i, k: (i, 0)),   # x tile
                pl.BlockSpec((d_pad, th_eff), lambda i, k: (0, k)),   # w1 chunk
                pl.BlockSpec((1, th_eff), lambda i, k: (0, k)),       # b1 chunk
                pl.BlockSpec((th_eff, d_pad), lambda i, k: (k, 0)),   # w2 chunk
                pl.BlockSpec((1, d_pad), lambda i, k: (0, 0)),        # b2
            ],
            out_specs=pl.BlockSpec((tm_eff, d_pad), lambda i, k: (i, 0)),
        ),
        compiler_params=pltpu.CompilerParams(
            dimension_semantics=("parallel", "arbitrary"),
            vmem_limit_bytes=vmem_limit,
        ),
        cost_estimate=pl.CostEstimate(
            flops=flops,
            transcendentals=transcendentals,
            bytes_accessed=bytes_accessed,
        ),
    )(x2, w1p, b1p, w2p, b2p)

    out2 = out2[:n, :d_model]
    if out2.dtype != orig_dtype:
        out2 = out2.astype(orig_dtype)
    return out2.reshape(x.shape)


def init_params(key, d_model):
    """Deterministic init matching nn.Linear's U(-1/sqrt(fan_in), 1/sqrt(fan_in))."""
    d_hidden = 4 * d_model
    k1, k2, k3, k4 = jax.random.split(key, 4)
    lim1 = 1.0 / jnp.sqrt(d_model)
    lim2 = 1.0 / jnp.sqrt(d_hidden)
    w1 = jax.random.uniform(k1, (d_model, d_hidden), jnp.float32, -lim1, lim1)
    b1 = jax.random.uniform(k2, (d_hidden,), jnp.float32, -lim1, lim1)
    w2 = jax.random.uniform(k3, (d_hidden, d_model), jnp.float32, -lim2, lim2)
    b2 = jax.random.uniform(k4, (d_model,), jnp.float32, -lim2, lim2)
    return w1, b1, w2, b2


if __name__ == "__main__":
    key = jax.random.PRNGKey(0)
    k_x, k_p = jax.random.split(key)

    batch, seq, d_model = 2, 8, 32
    x = jax.random.normal(k_x, (batch, seq, d_model), dtype=jnp.float32)
    w1, b1, w2, b2 = init_params(k_p, d_model)

    params = prepare_params(w1, b1, w2, b2)   # one-time weight cast/pad
    out = feed_forward(x, *params)
    out = jax.block_until_ready(out)
    assert out.shape == (batch, seq, d_model)
    assert out.dtype == x.dtype

    # Reference mirroring the kernel's numerics (bf16 MXU operands, f32 math).
    def bf(a):
        return a.astype(jnp.bfloat16).astype(jnp.float32)

    x2 = x.reshape(batch * seq, d_model)
    h_ref = bf(x2) @ bf(w1) + b1
    h_ref = 0.5 * h_ref * (1.0 + jax.lax.erf(h_ref * _INV_SQRT2))
    ref = (bf(h_ref) @ bf(w2) + b2).reshape(batch, seq, d_model)
    assert jnp.allclose(out, ref, atol=2e-3, rtol=2e-3), (
        float(jnp.max(jnp.abs(out - ref))))

    # Looser sanity check against the exact f32 FFN (bf16 rounding only).
    h_f32 = x2 @ w1 + b1
    h_f32 = 0.5 * h_f32 * (1.0 + jax.lax.erf(h_f32 * _INV_SQRT2))
    ref_f32 = (h_f32 @ w2 + b2).reshape(batch, seq, d_model)
    assert jnp.allclose(out, ref_f32, atol=5e-2, rtol=5e-2)

    print("KERNEL_OK")
</pallas_src>

<mosaic_0001>
module attributes {stable_mosaic.version = 11 : i64} {
  func.func @_ffn_kernel(%arg0: i32, %arg1: i32, %arg2: memref<16x128xf32, #tpu.memory_space<vmem>>, %arg3: memref<128x128xbf16, #tpu.memory_space<vmem>>, %arg4: memref<1x128xf32, #tpu.memory_space<vmem>>, %arg5: memref<128x128xbf16, #tpu.memory_space<vmem>>, %arg6: memref<1x128xf32, #tpu.memory_space<vmem>>, %arg7: memref<16x128xf32, #tpu.memory_space<vmem>>) attributes {dimension_semantics = [#tpu.dimension_semantics<parallel>, #tpu.dimension_semantics<arbitrary>], iteration_bounds = array<i64: 1, 1>, scalar_prefetch = 0 : i64, scratch_operands = 0 : i64, tpu.core_type = #tpu.core_type<tc>, window_params = [{transform_indices = @transform_0, window_bounds = array<i64: 16, 128>}, {transform_indices = @transform_1, window_bounds = array<i64: 128, 128>}, {transform_indices = @transform_2, window_bounds = array<i64: 1, 128>}, {transform_indices = @transform_3, window_bounds = array<i64: 128, 128>}, {pipeline_mode = #tpu.pipeline_mode<synchronous>, transform_indices = @transform_4, window_bounds = array<i64: 1, 128>}, {transform_indices = @transform_5, window_bounds = array<i64: 16, 128>}]} {
    %c0 = arith.constant 0 : index
    %c0_0 = arith.constant 0 : index
    %0 = vector.load %arg2[%c0, %c0_0] : memref<16x128xf32, #tpu.memory_space<vmem>>, vector<16x128xf32>
    %1 = arith.truncf %0 : vector<16x128xf32> to vector<16x128xbf16>
    %c0_1 = arith.constant 0 : index
    %c0_2 = arith.constant 0 : index
    %2 = vector.load %arg3[%c0_1, %c0_2] : memref<128x128xbf16, #tpu.memory_space<vmem>>, vector<128x128xbf16>
    %cst = arith.constant dense<0.000000e+00> : vector<16x128xf32>
    %3 = tpu.matmul %1, %2, %cst {dimension_numbers = #tpu.dot_dimension_numbers<[1], [0], [0], [1], [0, 0, 1, 1], [], []>} : vector<16x128xbf16>, vector<128x128xbf16>, vector<16x128xf32> -> vector<16x128xf32>
    %c0_3 = arith.constant 0 : index
    %c0_4 = arith.constant 0 : index
    %4 = vector.load %arg4[%c0_3, %c0_4] : memref<1x128xf32, #tpu.memory_space<vmem>>, vector<1x128xf32>
    %5 = vector.broadcast %4 : vector<1x128xf32> to vector<16x128xf32>
    %6 = arith.addf %3, %5 : vector<16x128xf32>
    %cst_5 = arith.constant 5.000000e-01 : f32
    %7 = vector.broadcast %cst_5 : f32 to vector<16x128xf32>
    %8 = arith.mulf %7, %6 : vector<16x128xf32>
    %cst_6 = arith.constant 0.707106769 : f32
    %9 = vector.broadcast %cst_6 : f32 to vector<16x128xf32>
    %10 = arith.mulf %6, %9 : vector<16x128xf32>
    %11 = math.erf %10 : vector<16x128xf32>
    %cst_7 = arith.constant 1.000000e+00 : f32
    %12 = vector.broadcast %cst_7 : f32 to vector<16x128xf32>
    %13 = arith.addf %12, %11 : vector<16x128xf32>
    %14 = arith.mulf %8, %13 : vector<16x128xf32>
    %15 = arith.truncf %14 : vector<16x128xf32> to vector<16x128xbf16>
    %c0_8 = arith.constant 0 : index
    %c0_9 = arith.constant 0 : index
    %16 = vector.load %arg5[%c0_8, %c0_9] : memref<128x128xbf16, #tpu.memory_space<vmem>>, vector<128x128xbf16>
    %cst_10 = arith.constant dense<0.000000e+00> : vector<16x128xf32>
    %17 = tpu.matmul %15, %16, %cst_10 {dimension_numbers = #tpu.dot_dimension_numbers<[1], [0], [0], [1], [0, 0, 1, 1], [], []>} : vector<16x128xbf16>, vector<128x128xbf16>, vector<16x128xf32> -> vector<16x128xf32>
    %c0_i32 = arith.constant 0 : i32
    %18 = arith.cmpi eq, %arg1, %c0_i32 : i32
    %19 = arith.extui %18 : i1 to i32
    %c0_i32_11 = arith.constant 0 : i32
    %20 = arith.cmpi ne, %19, %c0_i32_11 : i32
    scf.if %20 {
      %c0_14 = arith.constant 0 : index
      %c0_15 = arith.constant 0 : index
      %24 = vector.load %arg6[%c0_14, %c0_15] : memref<1x128xf32, #tpu.memory_space<vmem>>, vector<1x128xf32>
      %25 = vector.broadcast %24 : vector<1x128xf32> to vector<16x128xf32>
      %26 = arith.addf %25, %17 : vector<16x128xf32>
      %c0_16 = arith.constant 0 : index
      %c0_17 = arith.constant 0 : index
      %27 = vector.load %arg7[%c0_16, %c0_17] : memref<16x128xf32, #tpu.memory_space<vmem>>, vector<16x128xf32>
      tpu.vector_store %arg7[%c0_16, %c0_17], %26 {strides = array<i32>} : memref<16x128xf32, #tpu.memory_space<vmem>>, vector<16x128xf32>,
    } else {
    }
    %c0_i32_12 = arith.constant 0 : i32
    %21 = arith.cmpi sgt, %arg1, %c0_i32_12 : i32
    %22 = arith.extui %21 : i1 to i32
    %c0_i32_13 = arith.constant 0 : i32
    %23 = arith.cmpi ne, %22, %c0_i32_13 : i32
    scf.if %23 {
      %c0_14 = arith.constant 0 : index
      %c0_15 = arith.constant 0 : index
      %24 = vector.load %arg7[%c0_14, %c0_15] : memref<16x128xf32, #tpu.memory_space<vmem>>, vector<16x128xf32>
      %25 = arith.addf %24, %17 : vector<16x128xf32>
      %c0_16 = arith.constant 0 : index
      %c0_17 = arith.constant 0 : index
      %26 = vector.load %arg7[%c0_16, %c0_17] : memref<16x128xf32, #tpu.memory_space<vmem>>, vector<16x128xf32>
      tpu.vector_store %arg7[%c0_16, %c0_17], %25 {strides = array<i32>} : memref<16x128xf32, #tpu.memory_space<vmem>>, vector<16x128xf32>,
    } else {
    }
    return
  }
  func.func @transform_0(%arg0: i32, %arg1: i32) -> (i32, i32) {
    %c0_i32 = arith.constant 0 : i32
    %c0_i32_0 = arith.constant 0 : i32
    return %arg0, %c0_i32 : i32, i32
  }
  func.func @transform_1(%arg0: i32, %arg1: i32) -> (i32, i32) {
    %c0_i32 = arith.constant 0 : i32
    %c0_i32_0 = arith.constant 0 : i32
    return %c0_i32, %arg1 : i32, i32
  }
  func.func @transform_2(%arg0: i32, %arg1: i32) -> (i32, i32) {
    %c0_i32 = arith.constant 0 : i32
    %c0_i32_0 = arith.constant 0 : i32
    return %c0_i32, %arg1 : i32, i32
  }
  func.func @transform_3(%arg0: i32, %arg1: i32) -> (i32, i32) {
    %c0_i32 = arith.constant 0 : i32
    %c0_i32_0 = arith.constant 0 : i32
    return %arg1, %c0_i32 : i32, i32
  }
  func.func @transform_4(%arg0: i32, %arg1: i32) -> (i32, i32) {
    %c0_i32 = arith.constant 0 : i32
    %c0_i32_0 = arith.constant 0 : i32
    %c0_i32_1 = arith.constant 0 : i32
    return %c0_i32, %c0_i32_0 : i32, i32
  }
  func.func @transform_5(%arg0: i32, %arg1: i32) -> (i32, i32) {
    %c0_i32 = arith.constant 0 : i32
    %c0_i32_0 = arith.constant 0 : i32
    return %arg0, %c0_i32 : i32, i32
  }
}

</mosaic_0001>

<llo_original>
// kernel: feed_forward.1
$region0: #{feed_forward.1}
  #allocation0 [shape = 'u32[]', space=smem, size = 0x4, offset = 0x4, fixed_abs, tag = 'smem constant byte address 0x4 - core index']
  #allocation1 [shape = 'u32[144,128]{1,0:T(1,128)}', space=vmem, size = 0x12000, scoped, tag = 'internal scratch']
  %s0 = inlined_call_operand.vmem [shape: f32[16,128], index: 0, kind: input, shape index: {}]
  %s1 = inlined_call_operand.hbm [shape: bf16[128,128], index: 1, kind: input, shape index: {}]
  %s2 = inlined_call_operand.vmem [shape: f32[1,128], index: 2, kind: input, shape index: {}]
  %s3 = inlined_call_operand.hbm [shape: bf16[128,128], index: 3, kind: input, shape index: {}]
  %s4 = inlined_call_operand.vmem [shape: f32[1,128], index: 4, kind: input, shape index: {}]
  %s5 = inlined_call_operand.vmem [shape: f32[16,128], index: 5, kind: output, shape index: {}]
  %s6 = sld [smem:[#allocation0]]
  $region46: #{feed_forward.1} parent=0
    _
  %s8 = ssub.s32 1, %s6
  %s9 = scalar_select 0, %s8, %s6
  $region1: #{feed_forward.1} parent=0
    #allocation2 [shape = 'u8[32768]{0}', space=vmem, size = 0x8000, scoped, tag = 'input window, operand 1, single buffered']
    #allocation3 [shape = 's32[1]{0}', space=sflag, size = 0x4, scoped, tag = 'scoped memory for feed_forward.1']
    #allocation4 [shape = 'u8[32768]{0}', space=vmem, size = 0x8000, scoped, tag = 'input window, operand 3, single buffered']
    #allocation5 [shape = 's32[1]{0}', space=sflag, size = 0x4, scoped, tag = 'scoped memory for feed_forward.1']
    %10 = vsyncpa [#allocation3], 0
    %11 = vsyncpa [#allocation5], 0
    // Predicated region
    $region2: #{feed_forward.1} parent=1 // pred_check
      _
    $region3: #{feed_forward.1} parent=1 // pred_check_branch
      %13 = sbr.rel (0) target = $region5
    $region4: #{feed_forward.1} parent=1 // pred_region
      _
    $region5: #{feed_forward.1} parent=1 // pred_fallthru
      _
    // Predicated region
    $region6: #{feed_forward.1} parent=1 // pred_check
      _
    $region7: #{feed_forward.1} parent=1 // pred_check_branch
      %15 = sbr.rel (0) target = $region9
    $region8: #{feed_forward.1} parent=1 // pred_region
      %s17 = ssub.s32 1024, 1024
      %18 = vsyncadd [#allocation3], %s17
      %s19 = sshll.u32 [#allocation2], 4
      %s20 = int_to_ptr.vmem [resolvable:$true] %s19
      %25 = dma.hbm_to_vmem [thread:$0]  %s1, 1024, %s20, [#allocation3], 64, 64, 4
    $region9: #{feed_forward.1} parent=1 // pred_fallthru
      _
    // Predicated region
    $region10: #{feed_forward.1} parent=1 // pred_check
      _
    $region11: #{feed_forward.1} parent=1 // pred_check_branch
      %27 = sbr.rel (0) target = $region13
    $region12: #{feed_forward.1} parent=1 // pred_region
      _
    $region13: #{feed_forward.1} parent=1 // pred_fallthru
      _
    // Predicated region
    $region14: #{feed_forward.1} parent=1 // pred_check
      _
    $region15: #{feed_forward.1} parent=1 // pred_check_branch
      %29 = sbr.rel (0) target = $region17
    $region16: #{feed_forward.1} parent=1 // pred_region
      %s31 = ssub.s32 1024, 1024
      %32 = vsyncadd [#allocation5], %s31
      %s33 = sshll.u32 [#allocation4], 4
      %s34 = int_to_ptr.vmem [resolvable:$true] %s33
      %39 = dma.hbm_to_vmem [thread:$0]  %s3, 1024, %s34, [#allocation5], 64, 64, 4
    $region17: #{feed_forward.1} parent=1 // pred_fallthru
      _
    // Predicated region
    $region18: #{feed_forward.1} parent=1 // pred_check
      _
    $region19: #{feed_forward.1} parent=1 // pred_check_branch
      %41 = sbr.rel (0) target = $region21
    $region20: #{feed_forward.1} parent=1 // pred_region
      _
    $region21: #{feed_forward.1} parent=1 // pred_fallthru
      _
    // Predicated region
    $region22: #{feed_forward.1} parent=1 // pred_check
      _
    $region23: #{feed_forward.1} parent=1 // pred_check_branch
      %43 = sbr.rel (0) target = $region25
    $region24: #{feed_forward.1} parent=1 // pred_region
      %44 = dma.done [#allocation3], 1024
    $region25: #{feed_forward.1} parent=1 // pred_fallthru
      _
    // Predicated region
    $region26: #{feed_forward.1} parent=1 // pred_check
      _
    $region27: #{feed_forward.1} parent=1 // pred_check_branch
      %46 = sbr.rel (0) target = $region29
    $region28: #{feed_forward.1} parent=1 // pred_region
      %47 = dma.done [#allocation5], 1024
    $region29: #{feed_forward.1} parent=1 // pred_fallthru
      _
    %v49 = vld [vmem:[%s0] sm:$0xff]
    %v50 = vld [vmem:[%s0 + $0x8] sm:$0xff]
    %v51 = vpack.c.bf16 %v50, %v49
    %v52 = vld [vmem:[#allocation2] sm:$0xf]
    %v53 = vld [vmem:[#allocation2 + $0x4] sm:$0xf]
    %v54 = vld [vmem:[#allocation2 + $0x8] sm:$0xf]
    %v55 = vld [vmem:[#allocation2 + $0xc] sm:$0xf]
    %v56 = vld [vmem:[#allocation2 + $0x10] sm:$0xf]
    %v57 = vld [vmem:[#allocation2 + $0x14] sm:$0xf]
    %v58 = vld [vmem:[#allocation2 + $0x18] sm:$0xf]
    %v59 = vld [vmem:[#allocation2 + $0x1c] sm:$0xf]
    %v60 = vld [vmem:[#allocation2 + $0x20] sm:$0xf]
    %v61 = vld [vmem:[#allocation2 + $0x24] sm:$0xf]
    %v62 = vld [vmem:[#allocation2 + $0x28] sm:$0xf]
    %v63 = vld [vmem:[#allocation2 + $0x2c] sm:$0xf]
    %v64 = vld [vmem:[#allocation2 + $0x30] sm:$0xf]
    %v65 = vld [vmem:[#allocation2 + $0x34] sm:$0xf]
    %v66 = vld [vmem:[#allocation2 + $0x38] sm:$0xf]
    %v67 = vld [vmem:[#allocation2 + $0x3c] sm:$0xf]
    %v68 = vld [vmem:[%s2] sm:$0x1]
    %v70 = vlaneseq
    %v71 = vshrl.u32 %v70, 7
    %v72 = vsub.s32 0, %v71
    %v73 = vrot.slane %v68, %v72
    %v91 = vunpack.c.l.b16 %v52
    %v92 = vunpack.c.l.b16 %v53
    %v93 = vunpack.c.l.b16 %v54
    %v94 = vunpack.c.l.b16 %v55
    %v95 = vunpack.c.l.b16 %v56
    %v96 = vunpack.c.l.b16 %v57
    %v97 = vunpack.c.l.b16 %v58
    %v98 = vunpack.c.l.b16 %v59
    %v99 = vunpack.c.l.b16 %v60
    %v100 = vunpack.c.l.b16 %v61
    %v101 = vunpack.c.l.b16 %v62
    %v102 = vunpack.c.l.b16 %v63
    %v103 = vunpack.c.l.b16 %v64
    %v104 = vunpack.c.l.b16 %v65
    %v105 = vunpack.c.l.b16 %v66
    %v106 = vunpack.c.l.b16 %v67
    %v107 = vpack.c.b16 %v92, %v91
    %v108 = vpack.c.b16 %v94, %v93
    %v109 = vpack.c.b16 %v96, %v95
    %v110 = vpack.c.b16 %v98, %v97
    %v111 = vpack.c.b16 %v100, %v99
    %v112 = vpack.c.b16 %v102, %v101
    %v113 = vpack.c.b16 %v104, %v103
    %v114 = vpack.c.b16 %v106, %v105
    %123 = vmatprep.subr.bf16.mxu0 0
    %124 = vmatpush1.bf16.msra.mxu0 %v114
    %125 = vmatprep.subr.bf16.mxu0 0
    %126 = vmatpush1.bf16.msra.mxu0 %v113
    %127 = vmatprep.subr.bf16.mxu0 0
    %128 = vmatpush1.bf16.msra.mxu0 %v112
    %129 = vmatprep.subr.bf16.mxu0 0
    %130 = vmatpush1.bf16.msra.mxu0 %v111
    %131 = vmatprep.subr.bf16.mxu0 0
    %132 = vmatpush1.bf16.msra.mxu0 %v110
    %133 = vmatprep.subr.bf16.mxu0 0
    %134 = vmatpush1.bf16.msra.mxu0 %v109
    %135 = vmatprep.subr.bf16.mxu0 0
    %136 = vmatpush1.bf16.msra.mxu0 %v108
    %137 = vmatprep.subr.bf16.mxu0 0
    %138 = vmatpush1.bf16.msra.mxu0 %v107
    %139 = vmatprep.subr.bf16.mxu0 0
    %140 = vmatpush2.bf16.msra.mxu0 0
    %141 = vmatprep.subr.bf16.mxu0 0
    %142 = vmatpush2.bf16.msra.mxu0 0
    %143 = vmatprep.subr.bf16.mxu0 0
    %144 = vmatpush2.bf16.msra.mxu0 0
    %145 = vmatprep.subr.bf16.mxu0 0
    %146 = vmatpush2.bf16.msra.mxu0 0
    %147 = vmatprep.subr.bf16.mxu0 0
    %148 = vmatpush2.bf16.msra.mxu0 0
    %149 = vmatprep.subr.bf16.mxu0 0
    %150 = vmatpush2.bf16.msra.mxu0 0
    %151 = vmatprep.subr.bf16.mxu0 0
    %152 = vmatpush2.bf16.msra.mxu0 0
    %153 = vmatprep.subr.bf16.mxu0 0
    %154 = vmatpush2.bf16.msra.mxu0 0
    %155 = vmatprep.mubr.bf16.mxu0 0
    %156 = vmatmul.mubr.bf16.gmra.mxu0 %v51
    %v157 = vpop.f32.mrf.mxu0
    %v158 = vadd.f32 %v73, %v157
    %v159 = vpop.f32.mrf.mxu0
    %v160 = vpop.f32.mrf.mxu0
    %v161 = vadd.f32 %v73, %v160
    %v162 = vpop.f32.mrf.mxu0
    %163 = vdwg.mxu0
    %v164 = vmul.f32 %v158, 0.5
    %v165 = vmul.f32 %v161, 0.5
    %v166 = vmul.f32 %v158, 0.70710677
    %v167 = vmul.f32 %v161, 0.70710677
    %v168 = verf.f32.pop %v166
    %v169 = verf.f32.pop %v167
    %v170 = vadd.f32 %v168, 1.0
    %v171 = vadd.f32 %v169, 1.0
    %v172 = vmul.f32 %v164, %v170
    %v173 = vmul.f32 %v165, %v171
    %v174 = vpack.c.bf16 %v173, %v172
    %v175 = vld [vmem:[#allocation4] sm:$0xf]
    %v176 = vld [vmem:[#allocation4 + $0x4] sm:$0xf]
    %v177 = vld [vmem:[#allocation4 + $0x8] sm:$0xf]
    %v178 = vld [vmem:[#allocation4 + $0xc] sm:$0xf]
    %v179 = vld [vmem:[#allocation4 + $0x10] sm:$0xf]
    %v180 = vld [vmem:[#allocation4 + $0x14] sm:$0xf]
    %v181 = vld [vmem:[#allocation4 + $0x18] sm:$0xf]
    %v182 = vld [vmem:[#allocation4 + $0x1c] sm:$0xf]
    %v183 = vld [vmem:[#allocation4 + $0x20] sm:$0xf]
    %v184 = vld [vmem:[#allocation4 + $0x24] sm:$0xf]
    %v185 = vld [vmem:[#allocation4 + $0x28] sm:$0xf]
    %v186 = vld [vmem:[#allocation4 + $0x2c] sm:$0xf]
    %v187 = vld [vmem:[#allocation4 + $0x30] sm:$0xf]
    %v188 = vld [vmem:[#allocation4 + $0x34] sm:$0xf]
    %v189 = vld [vmem:[#allocation4 + $0x38] sm:$0xf]
    %v190 = vld [vmem:[#allocation4 + $0x3c] sm:$0xf]
    %v207 = vunpack.c.l.b16 %v175
    %v208 = vunpack.c.l.b16 %v176
    %v209 = vunpack.c.l.b16 %v177
    %v210 = vunpack.c.l.b16 %v178
    %v211 = vunpack.c.l.b16 %v179
    %v212 = vunpack.c.l.b16 %v180
    %v213 = vunpack.c.l.b16 %v181
    %v214 = vunpack.c.l.b16 %v182
    %v215 = vunpack.c.l.b16 %v183
    %v216 = vunpack.c.l.b16 %v184
    %v217 = vunpack.c.l.b16 %v185
    %v218 = vunpack.c.l.b16 %v186
    %v219 = vunpack.c.l.b16 %v187
    %v220 = vunpack.c.l.b16 %v188
    %v221 = vunpack.c.l.b16 %v189
    %v222 = vunpack.c.l.b16 %v190
    %v223 = vpack.c.b16 %v208, %v207
    %v224 = vpack.c.b16 %v210, %v209
    %v225 = vpack.c.b16 %v212, %v211
    %v226 = vpack.c.b16 %v214, %v213
    %v227 = vpack.c.b16 %v216, %v215
    %v228 = vpack.c.b16 %v218, %v217
    %v229 = vpack.c.b16 %v220, %v219
    %v230 = vpack.c.b16 %v222, %v221
    %239 = vmatprep.subr.bf16.mxu0 0
    %240 = vmatpush1.bf16.msra.mxu0 %v230
    %241 = vmatprep.subr.bf16.mxu0 0
    %242 = vmatpush1.bf16.msra.mxu0 %v229
    %243 = vmatprep.subr.bf16.mxu0 0
    %244 = vmatpush1.bf16.msra.mxu0 %v228
    %245 = vmatprep.subr.bf16.mxu0 0
    %246 = vmatpush1.bf16.msra.mxu0 %v227
    %247 = vmatprep.subr.bf16.mxu0 0
    %248 = vmatpush1.bf16.msra.mxu0 %v226
    %249 = vmatprep.subr.bf16.mxu0 0
    %250 = vmatpush1.bf16.msra.mxu0 %v225
    %251 = vmatprep.subr.bf16.mxu0 0
    %252 = vmatpush1.bf16.msra.mxu0 %v224
    %253 = vmatprep.subr.bf16.mxu0 0
    %254 = vmatpush1.bf16.msra.mxu0 %v223
    %255 = vmatprep.subr.bf16.mxu0 0
    %256 = vmatpush2.bf16.msra.mxu0 0
    %257 = vmatprep.subr.bf16.mxu0 0
    %258 = vmatpush2.bf16.msra.mxu0 0
    %259 = vmatprep.subr.bf16.mxu0 0
    %260 = vmatpush2.bf16.msra.mxu0 0
    %261 = vmatprep.subr.bf16.mxu0 0
    %262 = vmatpush2.bf16.msra.mxu0 0
    %263 = vmatprep.subr.bf16.mxu0 0
    %264 = vmatpush2.bf16.msra.mxu0 0
    %265 = vmatprep.subr.bf16.mxu0 0
    %266 = vmatpush2.bf16.msra.mxu0 0
    %267 = vmatprep.subr.bf16.mxu0 0
    %268 = vmatpush2.bf16.msra.mxu0 0
    %269 = vmatprep.subr.bf16.mxu0 0
    %270 = vmatpush2.bf16.msra.mxu0 0
    %271 = vmatprep.mubr.bf16.mxu0 0
    %272 = vmatmul.mubr.bf16.gmra.mxu0 %v174
    %v273 = vpop.f32.mrf.mxu0
    %v274 = vadd.f32 0.0, %v273
    %v275 = vpop.f32.mrf.mxu0
    %v276 = vpop.f32.mrf.mxu0
    %v277 = vadd.f32 0.0, %v276
    %v278 = vpop.f32.mrf.mxu0
    %279 = vdwg.mxu0
    %p280 = scmp.eq.s32.totalorder 0, 0
    // Predicated region
    $region30: #{feed_forward.1} parent=1 // pred_check
      %p281 = pneg %p280
    $region31: #{feed_forward.1} parent=1 // pred_check_branch
      %283 = sbr.rel (%p281) target = $region33
    $region32: #{feed_forward.1} parent=1 // pred_region
      %v284 = vld [vmem:[%s4] sm:$0x1]
      %v286 = vlaneseq
      %v287 = vshrl.u32 %v286, 7
      %v288 = vsub.s32 0, %v287
      %v289 = vrot.slane %v284, %v288
      %v291 = vadd.f32 %v289, %v274
      %v292 = vadd.f32 %v289, %v277
      %293 = vst [vmem:[%s5] sm:$0xff] %v291
      %294 = vst [vmem:[%s5 + $0x8] sm:$0xff] %v292
    $region33: #{feed_forward.1} parent=1 // pred_fallthru
      _
    %p295 = scmp.gt.s32.totalorder 0, 0
    // Predicated region
    $region34: #{feed_forward.1} parent=1 // pred_check
      %p296 = pneg %p295
    $region35: #{feed_forward.1} parent=1 // pred_check_branch
      %298 = sbr.rel (%p296) target = $region37
    $region36: #{feed_forward.1} parent=1 // pred_region
      %v299 = vld [vmem:[%s5] sm:$0xff]
      %v300 = vld [vmem:[%s5 + $0x8] sm:$0xff]
      %v301 = vadd.f32 %v299, %v274
      %v302 = vadd.f32 %v300, %v277
      %303 = vst [vmem:[%s5] sm:$0xff] %v301
      %304 = vst [vmem:[%s5 + $0x8] sm:$0xff] %v302
    $region37: #{feed_forward.1} parent=1 // pred_fallthru
      _
    // Predicated region
    $region38: #{feed_forward.1} parent=1 // pred_check
      _
    $region39: #{feed_forward.1} parent=1 // pred_check_branch
      %306 = sbr.rel (0) target = $region41
    $region40: #{feed_forward.1} parent=1 // pred_region
      _
    $region41: #{feed_forward.1} parent=1 // pred_fallthru
      _
    // Predicated region
    $region42: #{feed_forward.1} parent=1 // pred_check
      _
    $region43: #{feed_forward.1} parent=1 // pred_check_branch
      %308 = sbr.rel (0) target = $region45
    $region44: #{feed_forward.1} parent=1 // pred_region
      _
    $region45: #{feed_forward.1} parent=1 // pred_fallthru
      _
    %309 = vsyncpa [#allocation3], 1
    %310 = vsyncpa [#allocation5], 1

</llo_original>
